<compile_context>
chip_gen: v6e
topology: v6e:2x2x1
jax: 0.10.0
libtpu: 0.0.40
codegen_flags: <defaults>
</compile_context>

<pallas_src>
import functools
import math

import jax
import jax.numpy as jnp
from jax import lax
from jax.experimental import pallas as pl
from jax.experimental.pallas import tpu as pltpu


def _round_up(x, m):
    return ((x + m - 1) // m) * m


def _seq_block(s, target):
    """Largest multiple-of-8 divisor of s that is <= target (or s itself)."""
    if s <= target:
        return s
    for cand in range(target, 7, -8):
        if s % cand == 0:
            return cand
    return s


def _default_vmem_limit():
    """Raise the scoped-VMEM cap above the 16/32 MiB per-gen defaults so the
    larger tiles fit, while staying under v7x's 64 MiB physical VMEM."""
    try:
        cap = int(pltpu.get_tpu_info().vmem_capacity_bytes)
        return min((cap * 3) // 4, 64 * 1024 * 1024)
    except Exception:
        return 48 * 1024 * 1024


_VMEM_LIMIT = _default_vmem_limit()


# ----------------------------------------------------------------------------
# Tiled matmul kernel (fused QKV projection and the wo projection).
# ----------------------------------------------------------------------------
def _matmul_kernel(a_ref, b_ref, o_ref, acc_ref):
    @pl.when(pl.program_id(2) == 0)
    def _():
        acc_ref[...] = jnp.zeros_like(acc_ref)

    acc_ref[...] += jnp.dot(a_ref[...], b_ref[...],
                            preferred_element_type=jnp.float32)

    @pl.when(pl.program_id(2) == pl.num_programs(2) - 1)
    def _():
        o_ref[...] = acc_ref[...].astype(o_ref.dtype)


def pallas_matmul(a, b, *, tm=512, tk=256, tn=512):
    """C = A @ B with (tm, tn, tk) tiling and an f32 VMEM accumulator.

    M / N remainders are handled with a pl.cdiv grid (Pallas masks edge-block
    stores; garbage in edge input rows/cols only lands in discarded outputs).
    Only K is zero-padded, since garbage along the contraction would corrupt
    the accumulation.
    """
    M, K = a.shape
    K2, N = b.shape
    assert K == K2
    tm = min(tm, M)
    tn = min(tn, N)
    tk = min(tk, K)
    if K % tk != 0:
        Kp = _round_up(K, tk)
        a = jnp.pad(a, ((0, 0), (0, Kp - K)))
        b = jnp.pad(b, ((0, Kp - K), (0, 0)))
        K = Kp

    return pl.pallas_call(
        _matmul_kernel,
        out_shape=jax.ShapeDtypeStruct((M, N), a.dtype),
        grid_spec=pltpu.PrefetchScalarGridSpec(
            num_scalar_prefetch=0,
            grid=(pl.cdiv(M, tm), pl.cdiv(N, tn), K // tk),
            in_specs=[
                pl.BlockSpec((tm, tk), lambda i, j, k: (i, k)),
                pl.BlockSpec((tk, tn), lambda i, j, k: (k, j)),
            ],
            out_specs=pl.BlockSpec((tm, tn), lambda i, j, k: (i, j)),
            scratch_shapes=[pltpu.VMEM((tm, tn), jnp.float32)],
        ),
        compiler_params=pltpu.CompilerParams(
            dimension_semantics=("parallel", "parallel", "arbitrary"),
            vmem_limit_bytes=_VMEM_LIMIT,
        ),
    )(a, b)


# ----------------------------------------------------------------------------
# Flash-style selective attention kernel.
# ----------------------------------------------------------------------------
def _lane_cumsum(x, n):
    """Inclusive prefix sum along the last (lane) axis: log2(n) shift-and-add
    steps (pltpu.roll on the XLU + VPU adds) instead of an SxS matmul."""
    col = lax.broadcasted_iota(jnp.int32, x.shape, x.ndim - 1)
    d = 1
    while d < n:
        shifted = pltpu.roll(x, shift=d, axis=x.ndim - 1)
        x = x + jnp.where(col >= d, shifted, 0.0)
        d *= 2
    return x


def _selective_flash_kernel(q_ref, qp_ref, k_ref, v_ref, o_ref,
                            m_sc, l_sc, acc_sc, pfx_sc,
                            *, n_heads, n_kv_heads, n_rep, head_dim,
                            nq, tq, tk):
    i = pl.program_id(0)            # folded (batch, q-block) index
    ki = pl.program_id(1)
    nk = pl.num_programs(1)
    D = head_dim
    scale = 1.0 / math.sqrt(D)

    @pl.when(ki == 0)
    def _init():
        m_sc[...] = jnp.full_like(m_sc, -jnp.inf)
        l_sc[...] = jnp.zeros_like(l_sc)
        acc_sc[...] = jnp.zeros_like(acc_sc)
        pfx_sc[...] = jnp.zeros_like(pfx_sc)

    q_start = (i % nq) * tq
    kv_start = ki * tk

    # Causal skip: the k/v index_map is clamped to the diagonal, so blocks
    # beyond it are never DMA'd; this pl.when makes the corresponding grid
    # steps a no-op (they also contribute nothing to the selective prefix).
    @pl.when(kv_start < q_start + tq)
    def _compute():
        q = q_ref[...]          # (tq, n_heads * D)     heads packed along lanes
        k = k_ref[...]          # (tk, n_kv_heads * D)
        v = v_ref[...]          # (tk, n_kv_heads * D)
        qp = qp_ref[...] * scale  # (tq, D) head-0 query of the *previous* row

        rows = q_start + lax.broadcasted_iota(jnp.int32, (tq, tk), 0)
        cols = kv_start + lax.broadcasted_iota(jnp.int32, (tq, tk), 1)

        # ---- head-0 selective mask (reference: relu -> zero col0/diag ->
        # roll 1 row -> cumsum), carried across kv blocks as a running prefix.
        # Row i uses head-0 scores of row i-1, valid columns 1 <= c <= i-2. ----
        k0 = k[:, :D]
        s0 = lax.dot_general(qp, k0, (((1,), (1,)), ((), ())),
                             preferred_element_type=jnp.float32)
        s0 = jnp.where((cols >= 1) & (cols <= rows - 2),
                       jnp.maximum(s0, 0.0), 0.0)
        csum = _lane_cumsum(s0, tk)                        # in-block prefix
        sel = pfx_sc[...] + csum                           # (tq, tk)
        pfx_sc[...] = pfx_sc[...] + csum[:, tk - 1:tk]     # carry to next block

        bias = jnp.where(cols <= rows, 0.0, -jnp.inf) - sel   # causal + selective

        # ---- online-softmax update, grouped by kv head so kh/vh are sliced
        # once per group and shared by the n_rep query heads of that group ----
        for g in range(n_kv_heads):
            kh = k[:, g * D:(g + 1) * D]                   # (tk, D)
            vh = v[:, g * D:(g + 1) * D]                   # (tk, D)
            for r in range(n_rep):
                h = g * n_rep + r
                # Scale the (tq, D) operand, not the (tq, tk) score.
                qh = q[:, h * D:(h + 1) * D] * scale
                s = lax.dot_general(qh, kh, (((1,), (1,)), ((), ())),
                                    preferred_element_type=jnp.float32)
                s = s + bias
                m_prev = m_sc[h]                           # (tq, 1)
                m_new = jnp.maximum(m_prev, jnp.max(s, axis=-1, keepdims=True))
                alpha = jnp.exp(m_prev - m_new)
                p = jnp.exp(s - m_new)
                l_sc[h] = alpha * l_sc[h] + jnp.sum(p, axis=-1, keepdims=True)
                acc_sc[h] = alpha * acc_sc[h] + lax.dot_general(
                    p.astype(vh.dtype), vh, (((1,), (0,)), ((), ())),
                    preferred_element_type=jnp.float32)
                m_sc[h] = m_new

    @pl.when(ki == nk - 1)
    def _finalize():
        outs = []
        for h in range(n_heads):
            # Approx reciprocal on the EUP (keeps the divide off the VALU);
            # one Newton step restores near-exact f32 accuracy, once per block.
            l = l_sc[h]
            rcp = pl.reciprocal(l, approx=True)
            rcp = rcp * (2.0 - l * rcp)
            outs.append(acc_sc[h] * rcp)
        # Heads concatenated along lanes -> one lane-dense (tq, H*D) store,
        # already in the layout the wo projection consumes (no transpose).
        o_ref[...] = jnp.concatenate(outs, axis=-1).astype(o_ref.dtype)


def selective_attn_pallas(q, q0_prev, k, v, *, n_heads, n_kv_heads, head_dim,
                          q_block=256, kv_block=256):
    """q: (B, S, n_heads*D) packed; q0_prev: (B, S, D) head-0 query shifted by
    one row; k/v: (B, S, n_kv_heads*D) packed.  Returns (B, S, n_heads*D)."""
    B, S, Dq = q.shape
    Dkv = k.shape[-1]
    assert n_heads % n_kv_heads == 0
    n_rep = n_heads // n_kv_heads
    tq = _seq_block(S, q_block)
    tk = _seq_block(S, kv_block)
    nq, nk = S // tq, S // tk

    kernel = functools.partial(
        _selective_flash_kernel,
        n_heads=n_heads, n_kv_heads=n_kv_heads, n_rep=n_rep,
        head_dim=head_dim, nq=nq, tq=tq, tk=tk)

    # (B, nq) folded into one leading parallel axis: balances across the two
    # v7x TensorCores even when B == 1 or odd.
    def q_map(i, ki):
        return (i // nq, i % nq, 0)

    def kv_map(i, ki):
        # Clamp to the last kv block touching the causal diagonal of this
        # q block: repeating the previous block index makes Pallas skip the
        # DMA for fully-masked blocks entirely.
        qi = i % nq
        last = ((qi + 1) * tq - 1) // tk
        return (i // nq, jnp.minimum(ki, last), 0)

    return pl.pallas_call(
        kernel,
        out_shape=jax.ShapeDtypeStruct((B, S, Dq), q.dtype),
        grid_spec=pltpu.PrefetchScalarGridSpec(
            num_scalar_prefetch=0,
            grid=(B * nq, nk),
            in_specs=[
                pl.BlockSpec((pl.Squeezed(), tq, Dq), q_map),
                pl.BlockSpec((pl.Squeezed(), tq, head_dim), q_map),
                pl.BlockSpec((pl.Squeezed(), tk, Dkv), kv_map),
                pl.BlockSpec((pl.Squeezed(), tk, Dkv), kv_map),
            ],
            out_specs=pl.BlockSpec((pl.Squeezed(), tq, Dq), q_map),
            scratch_shapes=[
                pltpu.VMEM((n_heads, tq, 1), jnp.float32),         # running max
                pltpu.VMEM((n_heads, tq, 1), jnp.float32),         # running denom
                pltpu.VMEM((n_heads, tq, head_dim), jnp.float32),  # output acc
                pltpu.VMEM((tq, 1), jnp.float32),                  # selective prefix
            ],
        ),
        compiler_params=pltpu.CompilerParams(
            dimension_semantics=("parallel", "arbitrary"),
            vmem_limit_bytes=_VMEM_LIMIT,
        ),
    )(q, q0_prev, k, v)


# ----------------------------------------------------------------------------
# Plain-JAX glue: RoPE (elementwise) matching the torch code.
# ----------------------------------------------------------------------------
def _rotate_half(x):
    x_odd = x[..., ::2]
    x_even = x[..., 1::2]
    return jnp.concatenate([-x_even, x_odd], axis=-1)


def apply_rotary_emb(xq, xk, pos_cos, pos_sin):
    # xq/xk: (B, S, H, D);  pos_cos / pos_sin: (S, D // 2)
    cos_rep = jnp.repeat(pos_cos, 2, axis=-1)[None, :, None, :]
    sin_rep = jnp.repeat(pos_sin, 2, axis=-1)[None, :, None, :]
    xq_out = xq * cos_rep + _rotate_half(xq) * sin_rep
    xk_out = xk * cos_rep + _rotate_half(xk) * sin_rep
    return xq_out, xk_out


def prepare_attention_params(wq, wk, wv, wo):
    """One-time weight preprocessing (hoisted out of the per-call forward):
    fuse wq/wk/wv into a single (dim, Dq+2*Dkv) matrix and pre-transpose wo.
    Weights are stored torch-style as (out_features, in_features)."""
    w_qkv_t = jnp.concatenate([wq, wk, wv], axis=0).T
    wo_t = wo.T
    return w_qkv_t, wo_t


def selective_attention_forward(x, pos_cos, pos_sin, w_qkv_t, wo_t,
                                n_heads, n_kv_heads,
                                q_block=256, kv_block=256):
    B, S, dim = x.shape
    head_dim = dim // n_heads
    Dq = n_heads * head_dim
    Dkv = n_kv_heads * head_dim

    # Fused QKV projection: single pass over x, prepared weights (no per-call
    # concat/transpose HBM round trip).
    x2d = x.reshape(B * S, dim)
    qkv = pallas_matmul(x2d, w_qkv_t)
    xq = qkv[:, :Dq].reshape(B, S, n_heads, head_dim)
    xk = qkv[:, Dq:Dq + Dkv].reshape(B, S, n_kv_heads, head_dim)
    xv = qkv[:, Dq + Dkv:].reshape(B, S, n_kv_heads, head_dim)

    xq, xk = apply_rotary_emb(xq, xk, pos_cos, pos_sin)

    # Heads packed along lanes; NO (B,H,S,D) transpose and NO repeat_kv in HBM.
    q_packed = xq.reshape(B, S, Dq)
    k_packed = xk.reshape(B, S, Dkv)
    v_packed = xv.reshape(B, S, Dkv)
    # The reference's roll-by-one-row of the head-0 scores is folded into a
    # shifted head-0 query (row i sees head-0 query of row i-1).
    q0 = xq[:, :, 0, :]
    q0_prev = jnp.concatenate([jnp.zeros_like(q0[:, :1]), q0[:, :-1]], axis=1)

    attn = selective_attn_pallas(
        q_packed, q0_prev, k_packed, v_packed,
        n_heads=n_heads, n_kv_heads=n_kv_heads, head_dim=head_dim,
        q_block=q_block, kv_block=kv_block)                # (B, S, Dq)

    out = pallas_matmul(attn.reshape(B * S, Dq), wo_t).reshape(B, S, dim)
    return out
    # TODO(synk): kv_cache decode branch (stateful seqlen==1 path) and dropout
    # (p>0 training path) are not implemented; inference semantics only.


# ----------------------------------------------------------------------------
# Pure-JAX reference (mirrors the torch forward) for validation.
# ----------------------------------------------------------------------------
def reference_forward(x, pos_cos, pos_sin, wq, wk, wv, wo, n_heads, n_kv_heads):
    B, S, dim = x.shape
    head_dim = dim // n_heads
    n_rep = n_heads // n_kv_heads

    xq = (x @ wq.T).reshape(B, S, n_heads, head_dim)
    xk = (x @ wk.T).reshape(B, S, n_kv_heads, head_dim)
    xv = (x @ wv.T).reshape(B, S, n_kv_heads, head_dim)
    xq, xk = apply_rotary_emb(xq, xk, pos_cos, pos_sin)
    xk = jnp.repeat(xk, n_rep, axis=2)
    xv = jnp.repeat(xv, n_rep, axis=2)
    q = jnp.transpose(xq, (0, 2, 1, 3))
    k = jnp.transpose(xk, (0, 2, 1, 3))
    v = jnp.transpose(xv, (0, 2, 1, 3))

    logits = jnp.einsum("bhqd,bhkd->bhqk", q, k) / math.sqrt(head_dim)
    row = jnp.arange(S)[:, None]
    col = jnp.arange(S)[None, :]
    causal = jnp.where(col > row, -jnp.inf, 0.0)
    logits = logits + causal[None, None]

    s0 = jax.nn.relu(logits[:, 0])
    s0 = s0.at[..., 0].set(0.0)
    s0 = (1.0 - jnp.eye(S))[None] * s0
    s0 = jnp.roll(s0, 1, axis=-2)
    s0 = s0.at[..., 0, :].set(0.0)
    sel = jnp.cumsum(s0, axis=-1)
    logits = logits - sel[:, None]

    scores = jax.nn.softmax(logits.astype(jnp.float32), axis=-1).astype(q.dtype)
    out = jnp.einsum("bhqk,bhkd->bhqd", scores, v)
    out = jnp.transpose(out, (0, 2, 1, 3)).reshape(B, S, n_heads * head_dim)
    return out @ wo.T


# ----------------------------------------------------------------------------
# Test harness.
# ----------------------------------------------------------------------------
def _make_rope_tables(S, head_dim):
    pos = jnp.arange(S, dtype=jnp.float32)[:, None]
    inv_freq = 1.0 / (10000.0 ** (
        jnp.arange(0, head_dim, 2, dtype=jnp.float32) / head_dim))
    ang = pos * inv_freq[None, :]
    return jnp.cos(ang), jnp.sin(ang)


def _run_case(key, B, S, dim, n_heads, n_kv_heads, q_block, kv_block, tol):
    head_dim = dim // n_heads
    kx, kq, kk, kv_, ko = jax.random.split(key, 5)
    x = jax.random.normal(kx, (B, S, dim), jnp.float32)
    wq = jax.random.normal(kq, (n_heads * head_dim, dim), jnp.float32) * 0.05
    wk = jax.random.normal(kk, (n_kv_heads * head_dim, dim), jnp.float32) * 0.05
    wv = jax.random.normal(kv_, (n_kv_heads * head_dim, dim), jnp.float32) * 0.05
    wo = jax.random.normal(ko, (dim, n_heads * head_dim), jnp.float32) * 0.05
    pos_cos, pos_sin = _make_rope_tables(S, head_dim)

    # One-time weight preparation (done at init in real use, not per forward).
    w_qkv_t, wo_t = prepare_attention_params(wq, wk, wv, wo)

    out = selective_attention_forward(
        x, pos_cos, pos_sin, w_qkv_t, wo_t, n_heads, n_kv_heads,
        q_block=q_block, kv_block=kv_block)
    out = jax.block_until_ready(out)

    ref = reference_forward(x, pos_cos, pos_sin, wq, wk, wv, wo,
                            n_heads, n_kv_heads)
    assert out.shape == (B, S, dim)
    assert jnp.allclose(out, ref, atol=tol, rtol=tol), (
        f"Pallas output mismatch (S={S}, dim={dim}): "
        f"max|diff|={float(jnp.max(jnp.abs(out - ref)))}")


if __name__ == "__main__":
    key = jax.random.PRNGKey(0)
    k1, k2, k3 = jax.random.split(key, 3)
    # Small config consistent with the module: dim=32, n_heads=4, n_kv_heads=2,
    # head_dim=8, seqlen=8, batch=2 (single q/kv block).
    _run_case(k1, B=2, S=8, dim=32, n_heads=4, n_kv_heads=2,
              q_block=128, kv_block=128, tol=2e-4)
    # Multi-block case exercising the flash online-softmax, the selective-mask
    # prefix carry, and the clamped (DMA-skipped) above-diagonal kv blocks.
    _run_case(k2, B=2, S=32, dim=32, n_heads=4, n_kv_heads=2,
              q_block=16, kv_block=16, tol=2e-4)
    # head_dim=64 / B=1 case: exercises the 64-lane head slices and the folded
    # (B*nq) parallel axis flagged in the review (still small: S=64).
    _run_case(k3, B=1, S=64, dim=256, n_heads=4, n_kv_heads=2,
              q_block=32, kv_block=32, tol=1e-3)
    print("KERNEL_OK")
</pallas_src>

<mosaic_0001>
module attributes {stable_mosaic.version = 11 : i64} {
  func.func @_matmul_kernel(%arg0: i32, %arg1: i32, %arg2: i32, %arg3: memref<16x32xf32, #tpu.memory_space<vmem>>, %arg4: memref<32x64xf32, #tpu.memory_space<vmem>>, %arg5: memref<16x64xf32, #tpu.memory_space<vmem>>, %arg6: memref<16x64xf32, #tpu.memory_space<vmem>>) attributes {dimension_semantics = [#tpu.dimension_semantics<parallel>, #tpu.dimension_semantics<parallel>, #tpu.dimension_semantics<arbitrary>], iteration_bounds = array<i64: 1, 1, 1>, scalar_prefetch = 0 : i64, scratch_operands = 1 : i64, tpu.core_type = #tpu.core_type<tc>, window_params = [{transform_indices = @transform_0, window_bounds = array<i64: 16, 32>}, {transform_indices = @transform_1, window_bounds = array<i64: 32, 64>}, {transform_indices = @transform_2, window_bounds = array<i64: 16, 64>}]} {
    %c0_i32 = arith.constant 0 : i32
    %0 = arith.cmpi eq, %arg2, %c0_i32 : i32
    %1 = arith.extui %0 : i1 to i32
    %c0_i32_0 = arith.constant 0 : i32
    %2 = arith.cmpi ne, %1, %c0_i32_0 : i32
    scf.if %2 {
      %cst_10 = arith.constant 0.000000e+00 : f32
      %12 = vector.broadcast %cst_10 : f32 to vector<16x64xf32>
      %c0_11 = arith.constant 0 : index
      %c0_12 = arith.constant 0 : index
      %13 = vector.load %arg6[%c0_11, %c0_12] : memref<16x64xf32, #tpu.memory_space<vmem>>, vector<16x64xf32>
      tpu.vector_store %arg6[%c0_11, %c0_12], %12 {strides = array<i32>} : memref<16x64xf32, #tpu.memory_space<vmem>>, vector<16x64xf32>,
    } else {
    }
    %c0 = arith.constant 0 : index
    %c0_1 = arith.constant 0 : index
    %3 = vector.load %arg6[%c0, %c0_1] : memref<16x64xf32, #tpu.memory_space<vmem>>, vector<16x64xf32>
    %c0_2 = arith.constant 0 : index
    %c0_3 = arith.constant 0 : index
    %4 = vector.load %arg3[%c0_2, %c0_3] : memref<16x32xf32, #tpu.memory_space<vmem>>, vector<16x32xf32>
    %c0_4 = arith.constant 0 : index
    %c0_5 = arith.constant 0 : index
    %5 = vector.load %arg4[%c0_4, %c0_5] : memref<32x64xf32, #tpu.memory_space<vmem>>, vector<32x64xf32>
    %cst = arith.constant dense<0.000000e+00> : vector<16x64xf32>
    %6 = tpu.matmul %4, %5, %cst {dimension_numbers = #tpu.dot_dimension_numbers<[1], [0], [0], [1], [0, 0, 1, 1], [], []>} : vector<16x32xf32>, vector<32x64xf32>, vector<16x64xf32> -> vector<16x64xf32>
    %7 = arith.addf %3, %6 : vector<16x64xf32>
    %c0_6 = arith.constant 0 : index
    %c0_7 = arith.constant 0 : index
    %8 = vector.load %arg6[%c0_6, %c0_7] : memref<16x64xf32, #tpu.memory_space<vmem>>, vector<16x64xf32>
    tpu.vector_store %arg6[%c0_6, %c0_7], %7 {strides = array<i32>} : memref<16x64xf32, #tpu.memory_space<vmem>>, vector<16x64xf32>,
    %c0_i32_8 = arith.constant 0 : i32
    %9 = arith.cmpi eq, %arg2, %c0_i32_8 : i32
    %10 = arith.extui %9 : i1 to i32
    %c0_i32_9 = arith.constant 0 : i32
    %11 = arith.cmpi ne, %10, %c0_i32_9 : i32
    scf.if %11 {
      %c0_10 = arith.constant 0 : index
      %c0_11 = arith.constant 0 : index
      %12 = vector.load %arg6[%c0_10, %c0_11] : memref<16x64xf32, #tpu.memory_space<vmem>>, vector<16x64xf32>
      %c0_12 = arith.constant 0 : index
      %c0_13 = arith.constant 0 : index
      %13 = vector.load %arg5[%c0_12, %c0_13] : memref<16x64xf32, #tpu.memory_space<vmem>>, vector<16x64xf32>
      tpu.vector_store %arg5[%c0_12, %c0_13], %12 {strides = array<i32>} : memref<16x64xf32, #tpu.memory_space<vmem>>, vector<16x64xf32>,
    } else {
    }
    return
  }
  func.func @transform_0(%arg0: i32, %arg1: i32, %arg2: i32) -> (i32, i32) {
    %c0_i32 = arith.constant 0 : i32
    return %arg0, %arg2 : i32, i32
  }
  func.func @transform_1(%arg0: i32, %arg1: i32, %arg2: i32) -> (i32, i32) {
    %c0_i32 = arith.constant 0 : i32
    return %arg2, %arg1 : i32, i32
  }
  func.func @transform_2(%arg0: i32, %arg1: i32, %arg2: i32) -> (i32, i32) {
    %c0_i32 = arith.constant 0 : i32
    return %arg0, %arg1 : i32, i32
  }
}

</mosaic_0001>

<llo_original>
// kernel: tpu_custom_call.1
$region0: #{tpu_custom_call.1}
  #allocation0 [shape = 'u32[]', space=smem, size = 0x4, offset = 0x4, fixed_abs, tag = 'smem constant byte address 0x4 - core index']
  #allocation1 [shape = 'u32[144,128]{1,0:T(1,128)}', space=vmem, size = 0x12000, scoped, tag = 'internal scratch']
  #allocation2 [shape = 'f32[16,64]{1,0:T(8,128)}', space=vmem, size = 0x2000, scoped, tag = 'scratch operand']
  %s0 = inlined_call_operand.hbm [shape: f32[16,32], index: 0, kind: input, shape index: {}]
  %s1 = inlined_call_operand.hbm [shape: f32[32,64], index: 1, kind: input, shape index: {}]
  %s2 = inlined_call_operand.hbm [shape: f32[16,64], index: 2, kind: output, shape index: {}]
  %s3 = sld [smem:[#allocation0]]
  $region34: #{tpu_custom_call.1} parent=0
    _
  %s5 = ssub.s32 1, %s3
  %s6 = scalar_select 0, %s5, %s3
  $region1: #{tpu_custom_call.1} parent=0
    #allocation3 [shape = 'u8[8192]{0}', space=vmem, size = 0x2000, scoped, tag = 'input window, operand 0, single buffered']
    #allocation4 [shape = 's32[1]{0}', space=sflag, size = 0x4, scoped, tag = 'scoped memory for tpu_custom_call.1']
    #allocation5 [shape = 's32[1]{0}', space=sflag, size = 0x4, scoped, tag = 'scoped memory for tpu_custom_call.1']
    #allocation6 [shape = 'u8[16384]{0}', space=vmem, size = 0x4000, scoped, tag = 'input window, operand 1, single buffered']
    #allocation7 [shape = 's32[1]{0}', space=sflag, size = 0x4, scoped, tag = 'scoped memory for tpu_custom_call.1']
    #allocation8 [shape = 'u8[8192]{0}', space=vmem, size = 0x2000, scoped, tag = 'output window, operand 0, single buffered']
    %7 = vsyncpa [#allocation4], 0
    %8 = vsyncpa [#allocation7], 0
    %9 = vsyncpa [#allocation5], 0
    // Predicated region
    $region2: #{tpu_custom_call.1} parent=1 // pred_check
      _
    $region3: #{tpu_custom_call.1} parent=1 // pred_check_branch
      %11 = sbr.rel (0) target = $region5
    $region4: #{tpu_custom_call.1} parent=1 // pred_region
      %s13 = ssub.s32 256, 256
      %14 = vsyncadd [#allocation4], %s13
      %s15 = sshll.u32 [#allocation3], 4
      %s16 = int_to_ptr.vmem [resolvable:$true] %s15
      %21 = dma.hbm_to_vmem [thread:$0]  %s0, 256, %s16, [#allocation4], 128, 128, 8
    $region5: #{tpu_custom_call.1} parent=1 // pred_fallthru
      _
    // Predicated region
    $region6: #{tpu_custom_call.1} parent=1 // pred_check
      _
    $region7: #{tpu_custom_call.1} parent=1 // pred_check_branch
      %23 = sbr.rel (0) target = $region9
    $region8: #{tpu_custom_call.1} parent=1 // pred_region
      %s25 = ssub.s32 512, 512
      %26 = vsyncadd [#allocation7], %s25
      %s27 = sshll.u32 [#allocation6], 4
      %s28 = int_to_ptr.vmem [resolvable:$true] %s27
      %33 = dma.hbm_to_vmem [thread:$0]  %s1, 512, %s28, [#allocation7], 128, 128, 8
    $region9: #{tpu_custom_call.1} parent=1 // pred_fallthru
      _
    // Predicated region
    $region10: #{tpu_custom_call.1} parent=1 // pred_check
      _
    $region11: #{tpu_custom_call.1} parent=1 // pred_check_branch
      %35 = sbr.rel (0) target = $region13
    $region12: #{tpu_custom_call.1} parent=1 // pred_region
      %36 = dma.done [#allocation4], 256
    $region13: #{tpu_custom_call.1} parent=1 // pred_fallthru
      _
    // Predicated region
    $region14: #{tpu_custom_call.1} parent=1 // pred_check
      _
    $region15: #{tpu_custom_call.1} parent=1 // pred_check_branch
      %38 = sbr.rel (0) target = $region17
    $region16: #{tpu_custom_call.1} parent=1 // pred_region
      %39 = dma.done [#allocation7], 512
    $region17: #{tpu_custom_call.1} parent=1 // pred_fallthru
      _
    %p40 = scmp.eq.s32.totalorder 0, 0
    // Predicated region
    $region18: #{tpu_custom_call.1} parent=1 // pred_check
      %p41 = pneg %p40
    $region19: #{tpu_custom_call.1} parent=1 // pred_check_branch
      %43 = sbr.rel (%p41) target = $region21
    $region20: #{tpu_custom_call.1} parent=1 // pred_region
      %vm44 = vcmask 523264
      %45 = vst.msk [vmem:[#allocation2] sm:$0xff] %vm44, 0.0
      %46 = vst.msk [vmem:[#allocation2 + $0x8] sm:$0xff] %vm44, 0.0
    $region21: #{tpu_custom_call.1} parent=1 // pred_fallthru
      _
    %v47 = vld [vmem:[#allocation2] sm:$0xff]
    %v48 = vld [vmem:[#allocation2 + $0x8] sm:$0xff]
    %v49 = vld [vmem:[#allocation3] sm:$0xff]
    %v50 = vld [vmem:[#allocation3 + $0x8] sm:$0xff]
    %v51 = vld [vmem:[#allocation6] sm:$0xff]
    %v52 = vld [vmem:[#allocation6 + $0x8] sm:$0xff]
    %v53 = vld [vmem:[#allocation6 + $0x10] sm:$0xff]
    %v54 = vld [vmem:[#allocation6 + $0x18] sm:$0xff]
    %vm55 = vcmask 261120
    %v57 = vsel %vm55, %v49, 0
    %v60 = vsel %vm55, %v50, 0
    %62 = vmatprep.subr.mxu0 0.0
    %63 = vmatpush1.msra.mxu0 0.0
    %64 = vmatprep.subr.mxu0 0.0
    %65 = vmatpush1.msra.mxu0 0.0
    %66 = vmatprep.subr.mxu0 0.0
    %67 = vmatpush1.msra.mxu0 0.0
    %68 = vmatprep.subr.mxu0 0.0
    %69 = vmatpush1.msra.mxu0 0.0
    %70 = vmatprep.subr.mxu0 0.0
    %71 = vmatpush1.msra.mxu0 0.0
    %72 = vmatprep.subr.mxu0 0.0
    %73 = vmatpush1.msra.mxu0 0.0
    %74 = vmatprep.subr.mxu0 0.0
    %75 = vmatpush1.msra.mxu0 0.0
    %76 = vmatprep.subr.mxu0 0.0
    %77 = vmatpush1.msra.mxu0 0.0
    %78 = vmatprep.subr.mxu0 0.0
    %79 = vmatpush1.msra.mxu0 0.0
    %80 = vmatprep.subr.mxu0 0.0
    %81 = vmatpush1.msra.mxu0 0.0
    %82 = vmatprep.subr.mxu0 0.0
    %83 = vmatpush1.msra.mxu0 0.0
    %84 = vmatprep.subr.mxu0 0.0
    %85 = vmatpush1.msra.mxu0 0.0
    %86 = vmatprep.subr.mxu0 0.0
    %87 = vmatpush1.msra.mxu0 %v54
    %88 = vmatprep.subr.mxu0 0.0
    %89 = vmatpush1.msra.mxu0 %v53
    %90 = vmatprep.subr.mxu0 0.0
    %91 = vmatpush1.msra.mxu0 %v52
    %92 = vmatprep.subr.mxu0 0.0
    %93 = vmatpush1.msra.mxu0 %v51
    %94 = vmatprep.subr.mxu0 0.0
    %95 = vmatpush2.msra.mxu0 0.0
    %96 = vmatprep.subr.mxu0 0.0
    %97 = vmatpush2.msra.mxu0 0.0
    %98 = vmatprep.subr.mxu0 0.0
    %99 = vmatpush2.msra.mxu0 0.0
    %100 = vmatprep.subr.mxu0 0.0
    %101 = vmatpush2.msra.mxu0 0.0
    %102 = vmatprep.subr.mxu0 0.0
    %103 = vmatpush2.msra.mxu0 0.0
    %104 = vmatprep.subr.mxu0 0.0
    %105 = vmatpush2.msra.mxu0 0.0
    %106 = vmatprep.subr.mxu0 0.0
    %107 = vmatpush2.msra.mxu0 0.0
    %108 = vmatprep.subr.mxu0 0.0
    %109 = vmatpush2.msra.mxu0 0.0
    %110 = vmatprep.subr.mxu0 0.0
    %111 = vmatpush2.msra.mxu0 0.0
    %112 = vmatprep.subr.mxu0 0.0
    %113 = vmatpush2.msra.mxu0 0.0
    %114 = vmatprep.subr.mxu0 0.0
    %115 = vmatpush2.msra.mxu0 0.0
    %116 = vmatprep.subr.mxu0 0.0
    %117 = vmatpush2.msra.mxu0 0.0
    %118 = vmatprep.subr.mxu0 0.0
    %119 = vmatpush2.msra.mxu0 0.0
    %120 = vmatprep.subr.mxu0 0.0
    %121 = vmatpush2.msra.mxu0 0.0
    %122 = vmatprep.subr.mxu0 0.0
    %123 = vmatpush2.msra.mxu0 0.0
    %124 = vmatprep.subr.mxu0 0.0
    %125 = vmatpush2.msra.mxu0 0.0
    %126 = vmatprep.mubr.f32.mxu0 0.0
    %127 = vmatmul.mubr.f32.gmra.mxu0 %v57
    %v128 = vpop.f32.mrf.mxu0
    %v129 = vadd.f32 0.0, %v128
    %v130 = vpop.f32.mrf.mxu0
    %131 = vmatprep.mubr.f32.mxu0 0.0
    %132 = vmatmul.mubr.f32.gmra.mxu0 %v60
    %v133 = vpop.f32.mrf.mxu0
    %v134 = vadd.f32 0.0, %v133
    %v135 = vpop.f32.mrf.mxu0
    %136 = vdwg.mxu0
    %v137 = vadd.f32 %v47, %v129
    %v138 = vadd.f32 %v48, %v134
    %vm139 = vcmask 523264
    %140 = vst.msk [vmem:[#allocation2] sm:$0xff] %vm139, %v137
    %141 = vst.msk [vmem:[#allocation2 + $0x8] sm:$0xff] %vm139, %v138
    // Predicated region
    $region22: #{tpu_custom_call.1} parent=1 // pred_check
      %p142 = pneg %p40
    $region23: #{tpu_custom_call.1} parent=1 // pred_check_branch
      %144 = sbr.rel (%p142) target = $region25
    $region24: #{tpu_custom_call.1} parent=1 // pred_region
      %v145 = vld [vmem:[#allocation2] sm:$0xff]
      %v146 = vld [vmem:[#allocation2 + $0x8] sm:$0xff]
      %147 = vst.msk [vmem:[#allocation8] sm:$0xff] %vm139, %v145
      %148 = vst.msk [vmem:[#allocation8 + $0x8] sm:$0xff] %vm139, %v146
    $region25: #{tpu_custom_call.1} parent=1 // pred_fallthru
      _
    // Predicated region
    $region26: #{tpu_custom_call.1} parent=1 // pred_check
      _
    $region27: #{tpu_custom_call.1} parent=1 // pred_check_branch
      %150 = sbr.rel (0) target = $region29
    $region28: #{tpu_custom_call.1} parent=1 // pred_region
      %s152 = ssub.s32 256, 256
      %153 = vsyncadd [#allocation5], %s152
      %s154 = sshll.u32 [#allocation8], 4
      %s155 = int_to_ptr.vmem [resolvable:$true] %s154
      %160 = dma.vmem_to_hbm [thread:$0]  %s155, 256, %s2, [#allocation5], 128, 128, 8
    $region29: #{tpu_custom_call.1} parent=1 // pred_fallthru
      _
    // Predicated region
    $region30: #{tpu_custom_call.1} parent=1 // pred_check
      _
    $region31: #{tpu_custom_call.1} parent=1 // pred_check_branch
      %162 = sbr.rel (0) target = $region33
    $region32: #{tpu_custom_call.1} parent=1 // pred_region
      %163 = dma.done [#allocation5], 256
    $region33: #{tpu_custom_call.1} parent=1 // pred_fallthru
      _
    %164 = vsyncpa [#allocation4], 1
    %165 = vsyncpa [#allocation7], 1
    %166 = vsyncpa [#allocation5], 1

</llo_original>
